<compile_context>
chip_gen: v6e
topology: v6e:2x2x1
jax: 0.10.0
libtpu: 0.0.40
codegen_flags: <defaults>
</compile_context>

<pallas_src>
import jax
import jax.numpy as jnp
from jax.experimental import pallas as pl
from jax.experimental.pallas import tpu as pltpu


def _ctx_attn_kernel(x_ref, pc_ref, wi_ref, wa_ref, o_ref):
    # Per-grid-step view (one batch tile):
    #   x_ref  : (TB, S, H)  native dtype (f32 or bf16)
    #   pc_ref : (TB, H)     f32, folded context projection + bi + bc
    #   wi_ref : (H, H)      native dtype (resident)
    #   wa_ref : (1, H)      f32
    #   o_ref  : (TB, H)
    TB, S, H = x_ref.shape
    x = x_ref[...]                                           # native dtype -> MXU

    # projected_input: fold batch into the MXU M dimension, accumulate in f32.
    pi = jnp.dot(x.reshape(TB * S, H), wi_ref[...],
                 preferred_element_type=jnp.float32).reshape(TB, S, H)

    # tanh(projected_input + projected_context)   (f32 elementwise; safe on v5e)
    t = jnp.tanh(pi + pc_ref[...][:, None, :])

    # attention scores: VPU multiply + lane reduce over H -> lane-dense (TB, S)
    scores = jnp.sum(t * wa_ref[...], axis=-1)

    # softmax over the sequence (last) axis — exact division (approx reciprocal
    # is not accurate enough for f32 outputs at 1e-4 tolerance).
    m = jnp.max(scores, axis=-1, keepdims=True)
    e = jnp.exp(scores - m)
    w = e / jnp.sum(e, axis=-1, keepdims=True)

    # context_vector = sum_s w[b, s] * x[b, s, :]  ->  (TB, H)
    # Multiply in x's native dtype (no f32 copy of the x tile), accumulate f32.
    out = jnp.sum(w.astype(x.dtype)[:, :, None] * x, axis=1, dtype=jnp.float32)
    o_ref[...] = out.astype(o_ref.dtype)                     # dropout == identity (eval)


def _vmem_budget_bytes():
    """~75% of per-core VMEM (48 MiB v7x, 96 MiB v5e/v6e); conservative fallback."""
    cap = 64 * 1024 * 1024                       # v7x per-TC physical (smallest gen)
    try:
        cap = int(pltpu.get_tpu_info().vmem_capacity_bytes)
    except Exception:
        pass                                     # interpret mode / no TPU info
    return int(min(max(cap * 3 // 4, 32 * 1024 * 1024), 100 * 1024 * 1024))


def _choose_batch_tile(B, S, H, itemsize, vmem_budget_bytes):
    """VMEM-aware, sublane-aligned batch tile.

    Targets TB*S >= ~1024 rows for the folded (TB*S, H) MXU matmul, bounded by
    the per-step VMEM budget (x double-buffer + f32 intermediates + Wi), and
    prefers a tile that divides B exactly so no wrapper-side jnp.pad (extra
    HBM copy of x) is needed.
    """
    # Per batch row: x tile double-buffered + f32 pi/t intermediates + scores.
    bytes_per_b = S * H * (2 * itemsize + 8) + S * 8
    fixed = 2 * H * H * itemsize + 4 * H * (4 + itemsize)    # Wi dbl-buf, pc, out
    avail = max(int(vmem_budget_bytes) - fixed, bytes_per_b)
    tb_vmem = max(1, avail // bytes_per_b)
    tb_target = max(8, -(-1024 // max(S, 1)))                # ceil(1024 / S)
    tb = int(min(tb_vmem, tb_target))
    tb = max(8, (tb // 8) * 8)                               # multiple of 8, round down
    b_pad8 = ((B + 7) // 8) * 8
    tb = min(tb, b_pad8)
    if B % tb != 0:                                          # prefer a divisor of B
        for cand in range(tb, 7, -8):
            if B % cand == 0:
                tb = cand
                break
    return tb


def context_aware_attention(x, context, params, *, compute_dtype=None, batch_tile=None):
    """x: (B, S, H), context: (B, C) -> (B, H)."""
    B, S, H = x.shape
    wi_t, bi, wc_t, bc, wa_row, ba = params
    del ba  # softmax is shift-invariant; the attention-layer bias cancels.
    out_dtype = x.dtype

    # Hoist the degenerate M=1 context projection to one XLA matmul (f32) and
    # fold both biases in.  pc is only (B, H) -> keep it in f32.
    pc = (context.astype(jnp.float32) @ wc_t.astype(jnp.float32)
          + bc.astype(jnp.float32) + bi.astype(jnp.float32))          # (B, H)
    wa = wa_row.astype(jnp.float32)                                   # (1, H)

    # Optional bf16 streaming path for the hot buffer (x) and Wi.
    if compute_dtype is not None:
        x = x.astype(compute_dtype)
        wi = wi_t.astype(compute_dtype)
    else:
        wi = wi_t.astype(x.dtype)

    vmem_budget = _vmem_budget_bytes()
    tb = batch_tile or _choose_batch_tile(B, S, H, jnp.dtype(x.dtype).itemsize,
                                          vmem_budget)
    Bp = pl.cdiv(B, tb) * tb
    if Bp != B:
        # Only reached when no sublane-aligned divisor of B fits; padded rows
        # are sliced off below (their garbage softmax rows never escape).
        x = jnp.pad(x, ((0, Bp - B), (0, 0), (0, 0)))
        pc = jnp.pad(pc, ((0, Bp - B), (0, 0)))

    out = pl.pallas_call(
        _ctx_attn_kernel,
        out_shape=jax.ShapeDtypeStruct((Bp, H), out_dtype),
        grid=(Bp // tb,),
        in_specs=[
            pl.BlockSpec((tb, S, H), lambda b: (b, 0, 0)),   # x batch tile
            pl.BlockSpec((tb, H), lambda b: (b, 0)),         # folded context proj. (f32)
            pl.BlockSpec((H, H), lambda b: (0, 0)),          # Wi^T (resident)
            pl.BlockSpec((1, H), lambda b: (0, 0)),          # wa row (f32)
        ],
        out_specs=pl.BlockSpec((tb, H), lambda b: (b, 0)),
        compiler_params=pltpu.CompilerParams(
            dimension_semantics=("parallel",),
            vmem_limit_bytes=vmem_budget),
    )(x, pc, wi, wa)
    return out[:B]


def init_params(key, input_size, context_size, dtype=jnp.float32):
    """Deterministic synthetic parameters mirroring the nn.Linear shapes."""
    k = jax.random.split(key, 6)
    H, C = input_size, context_size
    # nn.Linear(H, H): weight (H, H), bias (H,) -> stored transposed (in, out)
    wi_t = jax.random.normal(k[0], (H, H), dtype) * 0.1
    bi = jax.random.normal(k[1], (1, H), dtype) * 0.1
    # nn.Linear(C, H): weight (H, C), bias (H,) -> stored transposed (C, H)
    wc_t = jax.random.normal(k[2], (C, H), dtype) * 0.1
    bc = jax.random.normal(k[3], (1, H), dtype) * 0.1
    # nn.Linear(H, 1): weight (1, H) -> stored as a (1, H) row, bias (1,)
    wa_row = jax.random.normal(k[4], (1, H), dtype) * 0.1
    ba = jax.random.normal(k[5], (1, 1), dtype) * 0.1
    return (wi_t, bi, wc_t, bc, wa_row, ba)


def reference(x, context, params):
    """Pure-JAX reference mirroring the PyTorch forward (eval mode)."""
    wi_t, bi, wc_t, bc, wa_row, ba = params
    pi = x @ wi_t + bi                                        # (B, S, H)
    pc = (context @ wc_t + bc)[:, None, :]                    # (B, 1, H)
    s = jnp.sum(jnp.tanh(pi + pc) * wa_row, axis=-1) + ba[0, 0]   # (B, S)
    w = jax.nn.softmax(s, axis=1)                             # (B, S)
    return jnp.einsum("bs,bsh->bh", w, x)                     # (B, H)


if __name__ == "__main__":
    B, S, H, C = 16, 8, 32, 16   # batch, seq, input_size, context_size
    key = jax.random.PRNGKey(0)
    kx, kc, kp = jax.random.split(key, 3)
    x = jax.random.normal(kx, (B, S, H), jnp.float32)
    context = jax.random.normal(kc, (B, C), jnp.float32)
    params = init_params(kp, H, C)

    ref = reference(x, context, params)

    # Full-precision path (exact softmax division) — tight tolerance.
    out = jax.block_until_ready(context_aware_attention(x, context, params))
    assert out.shape == (B, H)
    assert jnp.allclose(out, ref, atol=1e-4, rtol=1e-4), "f32 mismatch vs reference"

    # bf16 streaming path (halved HBM bytes, MXU-native dtype) — loose tolerance.
    out_bf16 = jax.block_until_ready(
        context_aware_attention(x, context, params, compute_dtype=jnp.bfloat16))
    assert out_bf16.shape == (B, H)
    assert jnp.allclose(out_bf16, ref, atol=5e-2, rtol=5e-2), "bf16 mismatch vs reference"

    print("KERNEL_OK")
</pallas_src>

<mosaic_0001>
module attributes {stable_mosaic.version = 11 : i64} {
  func.func @_ctx_attn_kernel(%arg0: i32, %arg1: memref<16x8x32xf32, #tpu.memory_space<vmem>>, %arg2: memref<16x32xf32, #tpu.memory_space<vmem>>, %arg3: memref<32x32xf32, #tpu.memory_space<vmem>>, %arg4: memref<1x32xf32, #tpu.memory_space<vmem>>, %arg5: memref<16x32xf32, #tpu.memory_space<vmem>>) attributes {dimension_semantics = [#tpu.dimension_semantics<parallel>], iteration_bounds = array<i64: 1>, scalar_prefetch = 0 : i64, scratch_operands = 0 : i64, tpu.core_type = #tpu.core_type<tc>, window_params = [{transform_indices = @transform_0, window_bounds = array<i64: 16, 8, 32>}, {transform_indices = @transform_1, window_bounds = array<i64: 16, 32>}, {pipeline_mode = #tpu.pipeline_mode<synchronous>, transform_indices = @transform_2, window_bounds = array<i64: 32, 32>}, {pipeline_mode = #tpu.pipeline_mode<synchronous>, transform_indices = @transform_3, window_bounds = array<i64: 1, 32>}, {transform_indices = @transform_4, window_bounds = array<i64: 16, 32>}]} {
    %c0 = arith.constant 0 : index
    %c0_0 = arith.constant 0 : index
    %c0_1 = arith.constant 0 : index
    %0 = vector.load %arg1[%c0, %c0_0, %c0_1] : memref<16x8x32xf32, #tpu.memory_space<vmem>>, vector<16x8x32xf32>
    %1 = vector.shape_cast %0 : vector<16x8x32xf32> to vector<128x32xf32>
    %c0_2 = arith.constant 0 : index
    %c0_3 = arith.constant 0 : index
    %2 = vector.load %arg3[%c0_2, %c0_3] : memref<32x32xf32, #tpu.memory_space<vmem>>, vector<32x32xf32>
    %cst = arith.constant dense<0.000000e+00> : vector<128x32xf32>
    %3 = tpu.matmul %1, %2, %cst {dimension_numbers = #tpu.dot_dimension_numbers<[1], [0], [0], [1], [0, 0, 1, 1], [], []>} : vector<128x32xf32>, vector<32x32xf32>, vector<128x32xf32> -> vector<128x32xf32>
    %4 = vector.shape_cast %3 : vector<128x32xf32> to vector<16x8x32xf32>
    %c0_4 = arith.constant 0 : index
    %c0_5 = arith.constant 0 : index
    %5 = vector.load %arg2[%c0_4, %c0_5] : memref<16x32xf32, #tpu.memory_space<vmem>>, vector<16x32xf32>
    %6 = vector.shape_cast %5 : vector<16x32xf32> to vector<16x1x32xf32>
    %7 = vector.broadcast %6 : vector<16x1x32xf32> to vector<16x8x32xf32>
    %8 = arith.addf %4, %7 : vector<16x8x32xf32>
    %9 = math.tanh %8 : vector<16x8x32xf32>
    %c0_6 = arith.constant 0 : index
    %c0_7 = arith.constant 0 : index
    %10 = vector.load %arg4[%c0_6, %c0_7] : memref<1x32xf32, #tpu.memory_space<vmem>>, vector<1x32xf32>
    %11 = vector.shape_cast %10 : vector<1x32xf32> to vector<1x1x32xf32>
    %12 = vector.broadcast %11 : vector<1x1x32xf32> to vector<16x8x32xf32>
    %13 = arith.mulf %9, %12 : vector<16x8x32xf32>
    %cst_8 = arith.constant dense<0.000000e+00> : vector<16x8xf32>
    %14 = vector.multi_reduction <add>, %13, %cst_8 [2] : vector<16x8x32xf32> to vector<16x8xf32>
    %cst_9 = arith.constant dense<0xFF800000> : vector<16xf32>
    %15 = vector.multi_reduction <maximumf>, %14, %cst_9 [1] : vector<16x8xf32> to vector<16xf32>
    %16 = vector.shape_cast %15 : vector<16xf32> to vector<16x1xf32>
    %17 = vector.broadcast %16 : vector<16x1xf32> to vector<16x8xf32>
    %18 = arith.subf %14, %17 : vector<16x8xf32>
    %19 = math.exp %18 : vector<16x8xf32>
    %cst_10 = arith.constant dense<0.000000e+00> : vector<16xf32>
    %20 = vector.multi_reduction <add>, %19, %cst_10 [1] : vector<16x8xf32> to vector<16xf32>
    %21 = vector.shape_cast %20 : vector<16xf32> to vector<16x1xf32>
    %22 = vector.broadcast %21 : vector<16x1xf32> to vector<16x8xf32>
    %23 = arith.divf %19, %22 : vector<16x8xf32>
    %24 = vector.shape_cast %23 : vector<16x8xf32> to vector<16x8x1xf32>
    %25 = vector.broadcast %24 : vector<16x8x1xf32> to vector<16x8x32xf32>
    %26 = arith.mulf %25, %0 : vector<16x8x32xf32>
    %cst_11 = arith.constant dense<0.000000e+00> : vector<16x32xf32>
    %27 = vector.multi_reduction <add>, %26, %cst_11 [1] : vector<16x8x32xf32> to vector<16x32xf32>
    %c0_12 = arith.constant 0 : index
    %c0_13 = arith.constant 0 : index
    %28 = vector.load %arg5[%c0_12, %c0_13] : memref<16x32xf32, #tpu.memory_space<vmem>>, vector<16x32xf32>
    tpu.vector_store %arg5[%c0_12, %c0_13], %27 {strides = array<i32>} : memref<16x32xf32, #tpu.memory_space<vmem>>, vector<16x32xf32>,
    return
  }
  func.func @transform_0(%arg0: i32) -> (i32, i32, i32) {
    %c0_i32 = arith.constant 0 : i32
    %c0_i32_0 = arith.constant 0 : i32
    %c0_i32_1 = arith.constant 0 : i32
    return %arg0, %c0_i32, %c0_i32_0 : i32, i32, i32
  }
  func.func @transform_1(%arg0: i32) -> (i32, i32) {
    %c0_i32 = arith.constant 0 : i32
    %c0_i32_0 = arith.constant 0 : i32
    return %arg0, %c0_i32 : i32, i32
  }
  func.func @transform_2(%arg0: i32) -> (i32, i32) {
    %c0_i32 = arith.constant 0 : i32
    %c0_i32_0 = arith.constant 0 : i32
    %c0_i32_1 = arith.constant 0 : i32
    return %c0_i32, %c0_i32_0 : i32, i32
  }
  func.func @transform_3(%arg0: i32) -> (i32, i32) {
    %c0_i32 = arith.constant 0 : i32
    %c0_i32_0 = arith.constant 0 : i32
    %c0_i32_1 = arith.constant 0 : i32
    return %c0_i32, %c0_i32_0 : i32, i32
  }
  func.func @transform_4(%arg0: i32) -> (i32, i32) {
    %c0_i32 = arith.constant 0 : i32
    %c0_i32_0 = arith.constant 0 : i32
    return %arg0, %c0_i32 : i32, i32
  }
}

</mosaic_0001>

<llo_original>
// kernel: tpu_custom_call.1
$region0: #{tpu_custom_call.1}
  #allocation0 [shape = 'u32[]', space=smem, size = 0x4, offset = 0x4, fixed_abs, tag = 'smem constant byte address 0x4 - core index']
  #allocation1 [shape = 'u32[144,128]{1,0:T(1,128)}', space=vmem, size = 0x12000, scoped, tag = 'internal scratch']
  %s0 = inlined_call_operand.hbm [shape: f32[16,8,32], index: 0, kind: input, shape index: {}]
  %s1 = inlined_call_operand.hbm [shape: f32[16,32], index: 1, kind: input, shape index: {}]
  %s2 = inlined_call_operand.hbm [shape: f32[32,32], index: 2, kind: input, shape index: {}]
  %s3 = inlined_call_operand.vmem [shape: f32[1,32], index: 3, kind: input, shape index: {}]
  %s4 = inlined_call_operand.hbm [shape: f32[16,32], index: 4, kind: output, shape index: {}]
  %s5 = sld [smem:[#allocation0]]
  $region38: #{tpu_custom_call.1} parent=0
    _
  %s7 = ssub.s32 1, %s5
  %s8 = scalar_select 0, %s7, %s5
  $region1: #{tpu_custom_call.1} parent=0
    #allocation2 [shape = 'u8[65536]{0}', space=vmem, size = 0x10000, scoped, tag = 'input window, operand 0, single buffered']
    #allocation3 [shape = 's32[1]{0}', space=sflag, size = 0x4, scoped, tag = 'scoped memory for tpu_custom_call.1']
    #allocation4 [shape = 's32[1]{0}', space=sflag, size = 0x4, scoped, tag = 'scoped memory for tpu_custom_call.1']
    #allocation5 [shape = 'u8[8192]{0}', space=vmem, size = 0x2000, scoped, tag = 'input window, operand 1, single buffered']
    #allocation6 [shape = 's32[1]{0}', space=sflag, size = 0x4, scoped, tag = 'scoped memory for tpu_custom_call.1']
    #allocation7 [shape = 'u8[16384]{0}', space=vmem, size = 0x4000, scoped, tag = 'input window, operand 2, single buffered']
    #allocation8 [shape = 'u8[8192]{0}', space=vmem, size = 0x2000, scoped, tag = 'output window, operand 0, single buffered']
    %9 = vsyncpa [#allocation3], 0
    %10 = vsyncpa [#allocation6], 0
    %11 = vsyncpa [#allocation4], 0
    // Predicated region
    $region2: #{tpu_custom_call.1} parent=1 // pred_check
      _
    $region3: #{tpu_custom_call.1} parent=1 // pred_check_branch
      %13 = sbr.rel (0) target = $region5
    $region4: #{tpu_custom_call.1} parent=1 // pred_region
      %s15 = ssub.s32 2048, 2048
      %16 = vsyncadd [#allocation3], %s15
      %s17 = sshll.u32 [#allocation2], 4
      %s18 = int_to_ptr.vmem [resolvable:$true] %s17
      %23 = dma.hbm_to_vmem [thread:$0]  %s0, 2048, %s18, [#allocation3], 128, 128, 8
    $region5: #{tpu_custom_call.1} parent=1 // pred_fallthru
      _
    // Predicated region
    $region6: #{tpu_custom_call.1} parent=1 // pred_check
      _
    $region7: #{tpu_custom_call.1} parent=1 // pred_check_branch
      %25 = sbr.rel (0) target = $region9
    $region8: #{tpu_custom_call.1} parent=1 // pred_region
      %s27 = ssub.s32 256, 256
      %28 = vsyncadd [#allocation6], %s27
      %s29 = sshll.u32 [#allocation5], 4
      %s30 = int_to_ptr.vmem [resolvable:$true] %s29
      %35 = dma.hbm_to_vmem [thread:$0]  %s1, 256, %s30, [#allocation6], 128, 128, 8
    $region9: #{tpu_custom_call.1} parent=1 // pred_fallthru
      _
    // Predicated region
    $region10: #{tpu_custom_call.1} parent=1 // pred_check
      _
    $region11: #{tpu_custom_call.1} parent=1 // pred_check_branch
      %37 = sbr.rel (0) target = $region13
    $region12: #{tpu_custom_call.1} parent=1 // pred_region
      %s39 = ssub.s32 512, 512
      %40 = vsyncadd [#allocation6], %s39
      %s41 = sshll.u32 [#allocation7], 4
      %s42 = int_to_ptr.vmem [resolvable:$true] %s41
      %47 = dma.hbm_to_vmem [thread:$0]  %s2, 512, %s42, [#allocation6], 128, 128, 8
    $region13: #{tpu_custom_call.1} parent=1 // pred_fallthru
      _
    // Predicated region
    $region14: #{tpu_custom_call.1} parent=1 // pred_check
      _
    $region15: #{tpu_custom_call.1} parent=1 // pred_check_branch
      %49 = sbr.rel (0) target = $region17
    $region16: #{tpu_custom_call.1} parent=1 // pred_region
      _
    $region17: #{tpu_custom_call.1} parent=1 // pred_fallthru
      _
    // Predicated region
    $region18: #{tpu_custom_call.1} parent=1 // pred_check
      _
    $region19: #{tpu_custom_call.1} parent=1 // pred_check_branch
      %51 = sbr.rel (0) target = $region21
    $region20: #{tpu_custom_call.1} parent=1 // pred_region
      %52 = dma.done [#allocation3], 2048
    $region21: #{tpu_custom_call.1} parent=1 // pred_fallthru
      _
    // Predicated region
    $region22: #{tpu_custom_call.1} parent=1 // pred_check
      _
    $region23: #{tpu_custom_call.1} parent=1 // pred_check_branch
      %54 = sbr.rel (0) target = $region25
    $region24: #{tpu_custom_call.1} parent=1 // pred_region
      %55 = dma.done [#allocation6], 256
    $region25: #{tpu_custom_call.1} parent=1 // pred_fallthru
      _
    // Predicated region
    $region26: #{tpu_custom_call.1} parent=1 // pred_check
      _
    $region27: #{tpu_custom_call.1} parent=1 // pred_check_branch
      %57 = sbr.rel (0) target = $region29
    $region28: #{tpu_custom_call.1} parent=1 // pred_region
      %58 = dma.done [#allocation6], 512
    $region29: #{tpu_custom_call.1} parent=1 // pred_fallthru
      _
    %v59 = vld [vmem:[#allocation2] sm:$0xff]
    %v60 = vld [vmem:[#allocation2 + $0x8] sm:$0xff]
    %v61 = vld [vmem:[#allocation2 + $0x10] sm:$0xff]
    %v62 = vld [vmem:[#allocation2 + $0x18] sm:$0xff]
    %v63 = vld [vmem:[#allocation2 + $0x20] sm:$0xff]
    %v64 = vld [vmem:[#allocation2 + $0x28] sm:$0xff]
    %v65 = vld [vmem:[#allocation2 + $0x30] sm:$0xff]
    %v66 = vld [vmem:[#allocation2 + $0x38] sm:$0xff]
    %v67 = vld [vmem:[#allocation2 + $0x40] sm:$0xff]
    %v68 = vld [vmem:[#allocation2 + $0x48] sm:$0xff]
    %v69 = vld [vmem:[#allocation2 + $0x50] sm:$0xff]
    %v70 = vld [vmem:[#allocation2 + $0x58] sm:$0xff]
    %v71 = vld [vmem:[#allocation2 + $0x60] sm:$0xff]
    %v72 = vld [vmem:[#allocation2 + $0x68] sm:$0xff]
    %v73 = vld [vmem:[#allocation2 + $0x70] sm:$0xff]
    %v74 = vld [vmem:[#allocation2 + $0x78] sm:$0xff]
    %v75 = vld [vmem:[#allocation7] sm:$0xff]
    %v76 = vld [vmem:[#allocation7 + $0x8] sm:$0xff]
    %v77 = vld [vmem:[#allocation7 + $0x10] sm:$0xff]
    %v78 = vld [vmem:[#allocation7 + $0x18] sm:$0xff]
    %vm79 = vcmask 261120
    %v81 = vsel %vm79, %v59, 0
    %v84 = vsel %vm79, %v60, 0
    %v87 = vsel %vm79, %v61, 0
    %v90 = vsel %vm79, %v62, 0
    %v93 = vsel %vm79, %v63, 0
    %v96 = vsel %vm79, %v64, 0
    %v99 = vsel %vm79, %v65, 0
    %v102 = vsel %vm79, %v66, 0
    %v105 = vsel %vm79, %v67, 0
    %v108 = vsel %vm79, %v68, 0
    %v111 = vsel %vm79, %v69, 0
    %v114 = vsel %vm79, %v70, 0
    %v117 = vsel %vm79, %v71, 0
    %v120 = vsel %vm79, %v72, 0
    %v123 = vsel %vm79, %v73, 0
    %v126 = vsel %vm79, %v74, 0
    %128 = vmatprep.subr.mxu0 0.0
    %129 = vmatpush1.msra.mxu0 0.0
    %130 = vmatprep.subr.mxu0 0.0
    %131 = vmatpush1.msra.mxu0 0.0
    %132 = vmatprep.subr.mxu0 0.0
    %133 = vmatpush1.msra.mxu0 0.0
    %134 = vmatprep.subr.mxu0 0.0
    %135 = vmatpush1.msra.mxu0 0.0
    %136 = vmatprep.subr.mxu0 0.0
    %137 = vmatpush1.msra.mxu0 0.0
    %138 = vmatprep.subr.mxu0 0.0
    %139 = vmatpush1.msra.mxu0 0.0
    %140 = vmatprep.subr.mxu0 0.0
    %141 = vmatpush1.msra.mxu0 0.0
    %142 = vmatprep.subr.mxu0 0.0
    %143 = vmatpush1.msra.mxu0 0.0
    %144 = vmatprep.subr.mxu0 0.0
    %145 = vmatpush1.msra.mxu0 0.0
    %146 = vmatprep.subr.mxu0 0.0
    %147 = vmatpush1.msra.mxu0 0.0
    %148 = vmatprep.subr.mxu0 0.0
    %149 = vmatpush1.msra.mxu0 0.0
    %150 = vmatprep.subr.mxu0 0.0
    %151 = vmatpush1.msra.mxu0 0.0
    %152 = vmatprep.subr.mxu0 0.0
    %153 = vmatpush1.msra.mxu0 %v78
    %154 = vmatprep.subr.mxu0 0.0
    %155 = vmatpush1.msra.mxu0 %v77
    %156 = vmatprep.subr.mxu0 0.0
    %157 = vmatpush1.msra.mxu0 %v76
    %158 = vmatprep.subr.mxu0 0.0
    %159 = vmatpush1.msra.mxu0 %v75
    %160 = vmatprep.subr.mxu0 0.0
    %161 = vmatpush2.msra.mxu0 0.0
    %162 = vmatprep.subr.mxu0 0.0
    %163 = vmatpush2.msra.mxu0 0.0
    %164 = vmatprep.subr.mxu0 0.0
    %165 = vmatpush2.msra.mxu0 0.0
    %166 = vmatprep.subr.mxu0 0.0
    %167 = vmatpush2.msra.mxu0 0.0
    %168 = vmatprep.subr.mxu0 0.0
    %169 = vmatpush2.msra.mxu0 0.0
    %170 = vmatprep.subr.mxu0 0.0
    %171 = vmatpush2.msra.mxu0 0.0
    %172 = vmatprep.subr.mxu0 0.0
    %173 = vmatpush2.msra.mxu0 0.0
    %174 = vmatprep.subr.mxu0 0.0
    %175 = vmatpush2.msra.mxu0 0.0
    %176 = vmatprep.subr.mxu0 0.0
    %177 = vmatpush2.msra.mxu0 0.0
    %178 = vmatprep.subr.mxu0 0.0
    %179 = vmatpush2.msra.mxu0 0.0
    %180 = vmatprep.subr.mxu0 0.0
    %181 = vmatpush2.msra.mxu0 0.0
    %182 = vmatprep.subr.mxu0 0.0
    %183 = vmatpush2.msra.mxu0 0.0
    %184 = vmatprep.subr.mxu0 0.0
    %185 = vmatpush2.msra.mxu0 0.0
    %186 = vmatprep.subr.mxu0 0.0
    %187 = vmatpush2.msra.mxu0 0.0
    %188 = vmatprep.subr.mxu0 0.0
    %189 = vmatpush2.msra.mxu0 0.0
    %190 = vmatprep.subr.mxu0 0.0
    %191 = vmatpush2.msra.mxu0 0.0
    %192 = vmatprep.mubr.f32.mxu0 0.0
    %193 = vmatmul.mubr.f32.gmra.mxu0 %v81
    %v194 = vpop.f32.mrf.mxu0
    %v195 = vadd.f32 0.0, %v194
    %v196 = vpop.f32.mrf.mxu0
    %197 = vmatprep.mubr.f32.mxu0 0.0
    %198 = vmatmul.mubr.f32.gmra.mxu0 %v84
    %v199 = vpop.f32.mrf.mxu0
    %v200 = vadd.f32 0.0, %v199
    %v201 = vpop.f32.mrf.mxu0
    %202 = vmatprep.mubr.f32.mxu0 0.0
    %203 = vmatmul.mubr.f32.gmra.mxu0 %v87
    %v204 = vpop.f32.mrf.mxu0
    %v205 = vadd.f32 0.0, %v204
    %v206 = vpop.f32.mrf.mxu0
    %207 = vmatprep.mubr.f32.mxu0 0.0
    %208 = vmatmul.mubr.f32.gmra.mxu0 %v90
    %v209 = vpop.f32.mrf.mxu0
    %v210 = vadd.f32 0.0, %v209
    %v211 = vpop.f32.mrf.mxu0
    %212 = vmatprep.mubr.f32.mxu0 0.0
    %213 = vmatmul.mubr.f32.gmra.mxu0 %v93
    %v214 = vpop.f32.mrf.mxu0
    %v215 = vadd.f32 0.0, %v214
    %v216 = vpop.f32.mrf.mxu0
    %217 = vmatprep.mubr.f32.mxu0 0.0
    %218 = vmatmul.mubr.f32.gmra.mxu0 %v96
    %v219 = vpop.f32.mrf.mxu0
    %v220 = vadd.f32 0.0, %v219
    %v221 = vpop.f32.mrf.mxu0
    %222 = vmatprep.mubr.f32.mxu0 0.0
    %223 = vmatmul.mubr.f32.gmra.mxu0 %v99
    %v224 = vpop.f32.mrf.mxu0
    %v225 = vadd.f32 0.0, %v224
    %v226 = vpop.f32.mrf.mxu0
    %227 = vmatprep.mubr.f32.mxu0 0.0
    %228 = vmatmul.mubr.f32.gmra.mxu0 %v102
    %v229 = vpop.f32.mrf.mxu0
    %v230 = vadd.f32 0.0, %v229
    %v231 = vpop.f32.mrf.mxu0
    %232 = vmatprep.mubr.f32.mxu0 0.0
    %233 = vmatmul.mubr.f32.gmra.mxu0 %v105
    %v234 = vpop.f32.mrf.mxu0
    %v235 = vadd.f32 0.0, %v234
    %v236 = vpop.f32.mrf.mxu0
    %237 = vmatprep.mubr.f32.mxu0 0.0
    %238 = vmatmul.mubr.f32.gmra.mxu0 %v108
    %v239 = vpop.f32.mrf.mxu0
    %v240 = vadd.f32 0.0, %v239
    %v241 = vpop.f32.mrf.mxu0
    %242 = vmatprep.mubr.f32.mxu0 0.0
    %243 = vmatmul.mubr.f32.gmra.mxu0 %v111
    %v244 = vpop.f32.mrf.mxu0
    %v245 = vadd.f32 0.0, %v244
    %v246 = vpop.f32.mrf.mxu0
    %247 = vmatprep.mubr.f32.mxu0 0.0
    %248 = vmatmul.mubr.f32.gmra.mxu0 %v114
    %v249 = vpop.f32.mrf.mxu0
    %v250 = vadd.f32 0.0, %v249
    %v251 = vpop.f32.mrf.mxu0
    %252 = vmatprep.mubr.f32.mxu0 0.0
    %253 = vmatmul.mubr.f32.gmra.mxu0 %v117
    %v254 = vpop.f32.mrf.mxu0
    %v255 = vadd.f32 0.0, %v254
    %v256 = vpop.f32.mrf.mxu0
    %257 = vmatprep.mubr.f32.mxu0 0.0
    %258 = vmatmul.mubr.f32.gmra.mxu0 %v120
    %v259 = vpop.f32.mrf.mxu0
    %v260 = vadd.f32 0.0, %v259
    %v261 = vpop.f32.mrf.mxu0
    %262 = vmatprep.mubr.f32.mxu0 0.0
    %263 = vmatmul.mubr.f32.gmra.mxu0 %v123
    %v264 = vpop.f32.mrf.mxu0
    %v265 = vadd.f32 0.0, %v264
    %v266 = vpop.f32.mrf.mxu0
    %267 = vmatprep.mubr.f32.mxu0 0.0
    %268 = vmatmul.mubr.f32.gmra.mxu0 %v126
    %v269 = vpop.f32.mrf.mxu0
    %v270 = vadd.f32 0.0, %v269
    %v271 = vpop.f32.mrf.mxu0
    %272 = vdwg.mxu0
    %v273 = vld [vmem:[#allocation5] sm:$0xff]
    %v274 = vld [vmem:[#allocation5 + $0x8] sm:$0xff]
    %v277 = vcombine.high %v273, %v273
    %v279 = vunpack.c.l.s4 1966171168
    %v280 = vunpack.c.0.s8 %v279
    %v281 = vlaneseq
    %v282 = vshrl.u32 %v281, 7
    %v283 = vsub.s32 %v280, %v282
    %v284 = vrot.slane %v273, %v283
    %v286 = vunpack.c.l.s4 1966171168
    %v287 = vunpack.c.0.s8 %v286
    %v288 = vlaneseq
    %v289 = vshrl.u32 %v288, 7
    %v290 = vsub.s32 %v287, %v289
    %v291 = vrot.slane %v277, %v290
    %v292 = vcombine.high %v284, %v284
    %v293 = vcombine.high %v291, %v291
    %v295 = vunpack.c.l.s4 1966171168
    %v296 = vunpack.c.0.s8 %v295
    %v297 = vlaneseq
    %v298 = vshrl.u32 %v297, 7
    %v299 = vsub.s32 %v296, %v298
    %v300 = vrot.slane %v284, %v299
    %v302 = vunpack.c.l.s4 1966171168
    %v303 = vunpack.c.0.s8 %v302
    %v304 = vlaneseq
    %v305 = vshrl.u32 %v304, 7
    %v306 = vsub.s32 %v303, %v305
    %v307 = vrot.slane %v291, %v306
    %v309 = vunpack.c.l.s4 1966171168
    %v310 = vunpack.c.0.s8 %v309
    %v311 = vlaneseq
    %v312 = vshrl.u32 %v311, 7
    %v313 = vsub.s32 %v310, %v312
    %v314 = vrot.slane %v292, %v313
    %v316 = vunpack.c.l.s4 1966171168
    %v317 = vunpack.c.0.s8 %v316
    %v318 = vlaneseq
    %v319 = vshrl.u32 %v318, 7
    %v320 = vsub.s32 %v317, %v319
    %v321 = vrot.slane %v293, %v320
    %v322 = vcombine.high %v300, %v300
    %v323 = vcombine.high %v307, %v307
    %v324 = vcombine.high %v314, %v314
    %v325 = vcombine.high %v321, %v321
    %v326 = vcombine.high %v274, %v274
    %v328 = vunpack.c.l.s4 1966171168
    %v329 = vunpack.c.0.s8 %v328
    %v330 = vlaneseq
    %v331 = vshrl.u32 %v330, 7
    %v332 = vsub.s32 %v329, %v331
    %v333 = vrot.slane %v274, %v332
    %v335 = vunpack.c.l.s4 1966171168
    %v336 = vunpack.c.0.s8 %v335
    %v337 = vlaneseq
    %v338 = vshrl.u32 %v337, 7
    %v339 = vsub.s32 %v336, %v338
    %v340 = vrot.slane %v326, %v339
    %v341 = vcombine.high %v333, %v333
    %v342 = vcombine.high %v340, %v340
    %v344 = vunpack.c.l.s4 1966171168
    %v345 = vunpack.c.0.s8 %v344
    %v346 = vlaneseq
    %v347 = vshrl.u32 %v346, 7
    %v348 = vsub.s32 %v345, %v347
    %v349 = vrot.slane %v333, %v348
    %v351 = vunpack.c.l.s4 1966171168
    %v352 = vunpack.c.0.s8 %v351
    %v353 = vlaneseq
    %v354 = vshrl.u32 %v353, 7
    %v355 = vsub.s32 %v352, %v354
    %v356 = vrot.slane %v340, %v355
    %v358 = vunpack.c.l.s4 1966171168
    %v359 = vunpack.c.0.s8 %v358
    %v360 = vlaneseq
    %v361 = vshrl.u32 %v360, 7
    %v362 = vsub.s32 %v359, %v361
    %v363 = vrot.slane %v341, %v362
    %v365 = vunpack.c.l.s4 1966171168
    %v366 = vunpack.c.0.s8 %v365
    %v367 = vlaneseq
    %v368 = vshrl.u32 %v367, 7
    %v369 = vsub.s32 %v366, %v368
    %v370 = vrot.slane %v342, %v369
    %v371 = vcombine.high %v349, %v349
    %v372 = vcombine.high %v356, %v356
    %v373 = vcombine.high %v363, %v363
    %v374 = vcombine.high %v370, %v370
    %v375 = vlaneseq
    %v376 = vshrl.u32 %v375, 7
    %v377 = vsub.s32 0, %v376
    %v378 = vrot.slane %v300, %v377
    %v379 = vlaneseq
    %v380 = vshrl.u32 %v379, 7
    %v381 = vsub.s32 0, %v380
    %v382 = vrot.slane %v314, %v381
    %v383 = vlaneseq
    %v384 = vshrl.u32 %v383, 7
    %v385 = vsub.s32 0, %v384
    %v386 = vrot.slane %v322, %v385
    %v387 = vlaneseq
    %v388 = vshrl.u32 %v387, 7
    %v389 = vsub.s32 0, %v388
    %v390 = vrot.slane %v324, %v389
    %v391 = vlaneseq
    %v392 = vshrl.u32 %v391, 7
    %v393 = vsub.s32 0, %v392
    %v394 = vrot.slane %v307, %v393
    %v395 = vlaneseq
    %v396 = vshrl.u32 %v395, 7
    %v397 = vsub.s32 0, %v396
    %v398 = vrot.slane %v321, %v397
    %v399 = vlaneseq
    %v400 = vshrl.u32 %v399, 7
    %v401 = vsub.s32 0, %v400
    %v402 = vrot.slane %v323, %v401
    %v403 = vlaneseq
    %v404 = vshrl.u32 %v403, 7
    %v405 = vsub.s32 0, %v404
    %v406 = vrot.slane %v325, %v405
    %v407 = vlaneseq
    %v408 = vshrl.u32 %v407, 7
    %v409 = vsub.s32 0, %v408
    %v410 = vrot.slane %v349, %v409
    %v411 = vlaneseq
    %v412 = vshrl.u32 %v411, 7
    %v413 = vsub.s32 0, %v412
    %v414 = vrot.slane %v363, %v413
    %v415 = vlaneseq
    %v416 = vshrl.u32 %v415, 7
    %v417 = vsub.s32 0, %v416
    %v418 = vrot.slane %v371, %v417
    %v419 = vlaneseq
    %v420 = vshrl.u32 %v419, 7
    %v421 = vsub.s32 0, %v420
    %v422 = vrot.slane %v373, %v421
    %v423 = vlaneseq
    %v424 = vshrl.u32 %v423, 7
    %v425 = vsub.s32 0, %v424
    %v426 = vrot.slane %v356, %v425
    %v427 = vlaneseq
    %v428 = vshrl.u32 %v427, 7
    %v429 = vsub.s32 0, %v428
    %v430 = vrot.slane %v370, %v429
    %v431 = vlaneseq
    %v432 = vshrl.u32 %v431, 7
    %v433 = vsub.s32 0, %v432
    %v434 = vrot.slane %v372, %v433
    %v435 = vlaneseq
    %v436 = vshrl.u32 %v435, 7
    %v437 = vsub.s32 0, %v436
    %v438 = vrot.slane %v374, %v437
    %v455 = vadd.f32 %v195, %v378
    %v456 = vadd.f32 %v200, %v382
    %v457 = vadd.f32 %v205, %v386
    %v458 = vadd.f32 %v210, %v390
    %v459 = vadd.f32 %v215, %v394
    %v460 = vadd.f32 %v220, %v398
    %v461 = vadd.f32 %v225, %v402
    %v462 = vadd.f32 %v230, %v406
    %v463 = vadd.f32 %v235, %v410
    %v464 = vadd.f32 %v240, %v414
    %v465 = vadd.f32 %v245, %v418
    %v466 = vadd.f32 %v250, %v422
    %v467 = vadd.f32 %v255, %v426
    %v468 = vadd.f32 %v260, %v430
    %v469 = vadd.f32 %v265, %v434
    %v470 = vadd.f32 %v270, %v438
    %v471 = vtanh.pop %v455
    %v472 = vtanh.pop %v456
    %v473 = vtanh.pop %v457
    %v474 = vtanh.pop %v458
    %v475 = vtanh.pop %v459
    %v476 = vtanh.pop %v460
    %v477 = vtanh.pop %v461
    %v478 = vtanh.pop %v462
    %v479 = vtanh.pop %v463
    %v480 = vtanh.pop %v464
    %v481 = vtanh.pop %v465
    %v482 = vtanh.pop %v466
    %v483 = vtanh.pop %v467
    %v484 = vtanh.pop %v468
    %v485 = vtanh.pop %v469
    %v486 = vtanh.pop %v470
    %v487 = vld [vmem:[%s3] sm:$0x1]
    %v489 = vlaneseq
    %v490 = vshrl.u32 %v489, 7
    %v491 = vsub.s32 0, %v490
    %v492 = vrot.slane %v487, %v491
    %v494 = vmul.f32 %v471, %v492
    %v495 = vmul.f32 %v472, %v492
    %v496 = vmul.f32 %v473, %v492
    %v497 = vmul.f32 %v474, %v492
    %v498 = vmul.f32 %v475, %v492
    %v499 = vmul.f32 %v476, %v492
    %v500 = vmul.f32 %v477, %v492
    %v501 = vmul.f32 %v478, %v492
    %v502 = vmul.f32 %v479, %v492
    %v503 = vmul.f32 %v480, %v492
    %v504 = vmul.f32 %v481, %v492
    %v505 = vmul.f32 %v482, %v492
    %v506 = vmul.f32 %v483, %v492
    %v507 = vmul.f32 %v484, %v492
    %v508 = vmul.f32 %v485, %v492
    %v509 = vmul.f32 %v486, %v492
    %v510 = vsel %vm79, %v494, 0.0
    %511 = vadd.xlane.f32.xlu0 %v510
    %v512 = vpop.xlane.xlu0 %511
    %v513 = vsel %vm79, %v495, 0.0
    %514 = vadd.xlane.f32.xlu0 %v513
    %v515 = vpop.xlane.xlu0 %514
    %v516 = vsel %vm79, %v496, 0.0
    %517 = vadd.xlane.f32.xlu0 %v516
    %v518 = vpop.xlane.xlu0 %517
    %v519 = vsel %vm79, %v497, 0.0
    %520 = vadd.xlane.f32.xlu0 %v519
    %v521 = vpop.xlane.xlu0 %520
    %v522 = vsel %vm79, %v498, 0.0
    %523 = vadd.xlane.f32.xlu0 %v522
    %v524 = vpop.xlane.xlu0 %523
    %v525 = vsel %vm79, %v499, 0.0
    %526 = vadd.xlane.f32.xlu0 %v525
    %v527 = vpop.xlane.xlu0 %526
    %v528 = vsel %vm79, %v500, 0.0
    %529 = vadd.xlane.f32.xlu0 %v528
    %v530 = vpop.xlane.xlu0 %529
    %v531 = vsel %vm79, %v501, 0.0
    %532 = vadd.xlane.f32.xlu0 %v531
    %v533 = vpop.xlane.xlu0 %532
    %v534 = vsel %vm79, %v502, 0.0
    %535 = vadd.xlane.f32.xlu0 %v534
    %v536 = vpop.xlane.xlu0 %535
    %v537 = vsel %vm79, %v503, 0.0
    %538 = vadd.xlane.f32.xlu0 %v537
    %v539 = vpop.xlane.xlu0 %538
    %v540 = vsel %vm79, %v504, 0.0
    %541 = vadd.xlane.f32.xlu0 %v540
    %v542 = vpop.xlane.xlu0 %541
    %v543 = vsel %vm79, %v505, 0.0
    %544 = vadd.xlane.f32.xlu0 %v543
    %v545 = vpop.xlane.xlu0 %544
    %v546 = vsel %vm79, %v506, 0.0
    %547 = vadd.xlane.f32.xlu0 %v546
    %v548 = vpop.xlane.xlu0 %547
    %v549 = vsel %vm79, %v507, 0.0
    %550 = vadd.xlane.f32.xlu0 %v549
    %v551 = vpop.xlane.xlu0 %550
    %v552 = vsel %vm79, %v508, 0.0
    %553 = vadd.xlane.f32.xlu0 %v552
    %v554 = vpop.xlane.xlu0 %553
    %v555 = vsel %vm79, %v509, 0.0
    %556 = vadd.xlane.f32.xlu0 %v555
    %v557 = vpop.xlane.xlu0 %556
    %v574 = vlaneseq
    %v575 = vand.u32 %v574, 127
    %v576 = vlaneseq
    %v577 = vshrl.u32 %v576, 7
    %v578 = vsub.s32 %v575, %v577
    %v579 = vrot.slane %v512, %v578
    %v580 = vlaneseq
    %v581 = vshrl.u32 %v580, 7
    %v582 = vsub.s32 %v575, %v581
    %v583 = vrot.slane %v515, %v582
    %v584 = vlaneseq
    %v585 = vshrl.u32 %v584, 7
    %v586 = vsub.s32 %v575, %v585
    %v587 = vrot.slane %v518, %v586
    %v588 = vlaneseq
    %v589 = vshrl.u32 %v588, 7
    %v590 = vsub.s32 %v575, %v589
    %v591 = vrot.slane %v521, %v590
    %v592 = vlaneseq
    %v593 = vshrl.u32 %v592, 7
    %v594 = vsub.s32 %v575, %v593
    %v595 = vrot.slane %v524, %v594
    %v596 = vlaneseq
    %v597 = vshrl.u32 %v596, 7
    %v598 = vsub.s32 %v575, %v597
    %v599 = vrot.slane %v527, %v598
    %v600 = vlaneseq
    %v601 = vshrl.u32 %v600, 7
    %v602 = vsub.s32 %v575, %v601
    %v603 = vrot.slane %v530, %v602
    %v604 = vlaneseq
    %v605 = vshrl.u32 %v604, 7
    %v606 = vsub.s32 %v575, %v605
    %v607 = vrot.slane %v533, %v606
    %v608 = vlaneseq
    %v609 = vshrl.u32 %v608, 7
    %v610 = vsub.s32 %v575, %v609
    %v611 = vrot.slane %v536, %v610
    %v612 = vlaneseq
    %v613 = vshrl.u32 %v612, 7
    %v614 = vsub.s32 %v575, %v613
    %v615 = vrot.slane %v539, %v614
    %v616 = vlaneseq
    %v617 = vshrl.u32 %v616, 7
    %v618 = vsub.s32 %v575, %v617
    %v619 = vrot.slane %v542, %v618
    %v620 = vlaneseq
    %v621 = vshrl.u32 %v620, 7
    %v622 = vsub.s32 %v575, %v621
    %v623 = vrot.slane %v545, %v622
    %v624 = vlaneseq
    %v625 = vshrl.u32 %v624, 7
    %v626 = vsub.s32 %v575, %v625
    %v627 = vrot.slane %v548, %v626
    %v628 = vlaneseq
    %v629 = vshrl.u32 %v628, 7
    %v630 = vsub.s32 %v575, %v629
    %v631 = vrot.slane %v551, %v630
    %v632 = vlaneseq
    %v633 = vshrl.u32 %v632, 7
    %v634 = vsub.s32 %v575, %v633
    %v635 = vrot.slane %v554, %v634
    %v636 = vlaneseq
    %v637 = vshrl.u32 %v636, 7
    %v638 = vsub.s32 %v575, %v637
    %v639 = vrot.slane %v557, %v638
    %vm640 = vcmask 1041409
    %v641 = vsel %vm640, %v583, %v579
    %vm642 = vcmask 1042434
    %v643 = vsel %vm642, %v587, %v641
    %vm644 = vcmask 1043459
    %v645 = vsel %vm644, %v591, %v643
    %vm646 = vcmask 1044484
    %v647 = vsel %vm646, %v595, %v645
    %vm648 = vcmask 1045509
    %v649 = vsel %vm648, %v599, %v647
    %vm650 = vcmask 1046534
    %v651 = vsel %vm650, %v603, %v649
    %vm652 = vcmask 1047559
    %v653 = vsel %vm652, %v607, %v651
    %v654 = vsel %vm640, %v615, %v611
    %v655 = vsel %vm642, %v619, %v654
    %v656 = vsel %vm644, %v623, %v655
    %v657 = vsel %vm646, %v627, %v656
    %v658 = vsel %vm648, %v631, %v657
    %v659 = vsel %vm650, %v635, %v658
    %v660 = vsel %vm652, %v639, %v659
    %vm663 = vcmask 64512
    %v664 = vsel %vm663, %v653, -inf
    %665 = vmax.xlane.f32.xlu0 %v664
    %v666 = vpop.xlane.xlu0 %665
    %v667 = vsel %vm663, %v660, -inf
    %668 = vmax.xlane.f32.xlu0 %v667
    %v669 = vpop.xlane.xlu0 %668
    %v672 = vlaneseq
    %v673 = vshrl.u32 %v672, 7
    %v674 = vsub.s32 0, %v673
    %v675 = vrot.slane %v666, %v674
    %v676 = vlaneseq
    %v677 = vshrl.u32 %v676, 7
    %v678 = vsub.s32 1, %v677
    %v679 = vrot.slane %v666, %v678
    %v680 = vlaneseq
    %v681 = vshrl.u32 %v680, 7
    %v682 = vsub.s32 2, %v681
    %v683 = vrot.slane %v666, %v682
    %v684 = vlaneseq
    %v685 = vshrl.u32 %v684, 7
    %v686 = vsub.s32 3, %v685
    %v687 = vrot.slane %v666, %v686
    %v688 = vlaneseq
    %v689 = vshrl.u32 %v688, 7
    %v690 = vsub.s32 4, %v689
    %v691 = vrot.slane %v666, %v690
    %v692 = vlaneseq
    %v693 = vshrl.u32 %v692, 7
    %v694 = vsub.s32 5, %v693
    %v695 = vrot.slane %v666, %v694
    %v696 = vlaneseq
    %v697 = vshrl.u32 %v696, 7
    %v698 = vsub.s32 6, %v697
    %v699 = vrot.slane %v666, %v698
    %v700 = vlaneseq
    %v701 = vshrl.u32 %v700, 7
    %v702 = vsub.s32 7, %v701
    %v703 = vrot.slane %v666, %v702
    %v704 = vlaneseq
    %v705 = vshrl.u32 %v704, 7
    %v706 = vsub.s32 0, %v705
    %v707 = vrot.slane %v669, %v706
    %v708 = vlaneseq
    %v709 = vshrl.u32 %v708, 7
    %v710 = vsub.s32 1, %v709
    %v711 = vrot.slane %v669, %v710
    %v712 = vlaneseq
    %v713 = vshrl.u32 %v712, 7
    %v714 = vsub.s32 2, %v713
    %v715 = vrot.slane %v669, %v714
    %v716 = vlaneseq
    %v717 = vshrl.u32 %v716, 7
    %v718 = vsub.s32 3, %v717
    %v719 = vrot.slane %v669, %v718
    %v720 = vlaneseq
    %v721 = vshrl.u32 %v720, 7
    %v722 = vsub.s32 4, %v721
    %v723 = vrot.slane %v669, %v722
    %v724 = vlaneseq
    %v725 = vshrl.u32 %v724, 7
    %v726 = vsub.s32 5, %v725
    %v727 = vrot.slane %v669, %v726
    %v728 = vlaneseq
    %v729 = vshrl.u32 %v728, 7
    %v730 = vsub.s32 6, %v729
    %v731 = vrot.slane %v669, %v730
    %v732 = vlaneseq
    %v733 = vshrl.u32 %v732, 7
    %v734 = vsub.s32 7, %v733
    %v735 = vrot.slane %v669, %v734
    %v752 = vsub.f32 %v512, %v675
    %v753 = vsub.f32 %v515, %v679
    %v754 = vsub.f32 %v518, %v683
    %v755 = vsub.f32 %v521, %v687
    %v756 = vsub.f32 %v524, %v691
    %v757 = vsub.f32 %v527, %v695
    %v758 = vsub.f32 %v530, %v699
    %v759 = vsub.f32 %v533, %v703
    %v760 = vsub.f32 %v536, %v707
    %v761 = vsub.f32 %v539, %v711
    %v762 = vsub.f32 %v542, %v715
    %v763 = vsub.f32 %v545, %v719
    %v764 = vsub.f32 %v548, %v723
    %v765 = vsub.f32 %v551, %v727
    %v766 = vsub.f32 %v554, %v731
    %v767 = vsub.f32 %v557, %v735
    %v768 = vmul.f32 %v752, 1.442695
    %v769 = vpow.pop %v768
    %v770 = vmul.f32 %v753, 1.442695
    %v771 = vpow.pop %v770
    %v772 = vmul.f32 %v754, 1.442695
    %v773 = vpow.pop %v772
    %v774 = vmul.f32 %v755, 1.442695
    %v775 = vpow.pop %v774
    %v776 = vmul.f32 %v756, 1.442695
    %v777 = vpow.pop %v776
    %v778 = vmul.f32 %v757, 1.442695
    %v779 = vpow.pop %v778
    %v780 = vmul.f32 %v758, 1.442695
    %v781 = vpow.pop %v780
    %v782 = vmul.f32 %v759, 1.442695
    %v783 = vpow.pop %v782
    %v784 = vmul.f32 %v760, 1.442695
    %v785 = vpow.pop %v784
    %v786 = vmul.f32 %v761, 1.442695
    %v787 = vpow.pop %v786
    %v788 = vmul.f32 %v762, 1.442695
    %v789 = vpow.pop %v788
    %v790 = vmul.f32 %v763, 1.442695
    %v791 = vpow.pop %v790
    %v792 = vmul.f32 %v764, 1.442695
    %v793 = vpow.pop %v792
    %v794 = vmul.f32 %v765, 1.442695
    %v795 = vpow.pop %v794
    %v796 = vmul.f32 %v766, 1.442695
    %v797 = vpow.pop %v796
    %v798 = vmul.f32 %v767, 1.442695
    %v799 = vpow.pop %v798
    %816 = vset.pattern.permute.xlu0 0
    %817 = vperm.xlu0 %816, %v769
    %v818 = vpop.permute.xlu0 %817
    %819 = vset.pattern.permute.xlu0 0
    %820 = vperm.xlu0 %819, %v771
    %v821 = vpop.permute.xlu0 %820
    %822 = vset.pattern.permute.xlu0 0
    %823 = vperm.xlu0 %822, %v773
    %v824 = vpop.permute.xlu0 %823
    %825 = vset.pattern.permute.xlu0 0
    %826 = vperm.xlu0 %825, %v775
    %v827 = vpop.permute.xlu0 %826
    %828 = vset.pattern.permute.xlu0 0
    %829 = vperm.xlu0 %828, %v777
    %v830 = vpop.permute.xlu0 %829
    %831 = vset.pattern.permute.xlu0 0
    %832 = vperm.xlu0 %831, %v779
    %v833 = vpop.permute.xlu0 %832
    %834 = vset.pattern.permute.xlu0 0
    %835 = vperm.xlu0 %834, %v781
    %v836 = vpop.permute.xlu0 %835
    %837 = vset.pattern.permute.xlu0 0
    %838 = vperm.xlu0 %837, %v783
    %v839 = vpop.permute.xlu0 %838
    %840 = vset.pattern.permute.xlu0 0
    %841 = vperm.xlu0 %840, %v785
    %v842 = vpop.permute.xlu0 %841
    %843 = vset.pattern.permute.xlu0 0
    %844 = vperm.xlu0 %843, %v787
    %v845 = vpop.permute.xlu0 %844
    %846 = vset.pattern.permute.xlu0 0
    %847 = vperm.xlu0 %846, %v789
    %v848 = vpop.permute.xlu0 %847
    %849 = vset.pattern.permute.xlu0 0
    %850 = vperm.xlu0 %849, %v791
    %v851 = vpop.permute.xlu0 %850
    %852 = vset.pattern.permute.xlu0 0
    %853 = vperm.xlu0 %852, %v793
    %v854 = vpop.permute.xlu0 %853
    %855 = vset.pattern.permute.xlu0 0
    %856 = vperm.xlu0 %855, %v795
    %v857 = vpop.permute.xlu0 %856
    %858 = vset.pattern.permute.xlu0 0
    %859 = vperm.xlu0 %858, %v797
    %v860 = vpop.permute.xlu0 %859
    %861 = vset.pattern.permute.xlu0 0
    %862 = vperm.xlu0 %861, %v799
    %v863 = vpop.permute.xlu0 %862
    %v864 = vlaneseq
    %v865 = vshrl.u32 %v864, 7
    %v866 = vsub.s32 %v575, %v865
    %v867 = vrot.slane %v818, %v866
    %v868 = vlaneseq
    %v869 = vshrl.u32 %v868, 7
    %v870 = vsub.s32 %v575, %v869
    %v871 = vrot.slane %v821, %v870
    %v872 = vlaneseq
    %v873 = vshrl.u32 %v872, 7
    %v874 = vsub.s32 %v575, %v873
    %v875 = vrot.slane %v824, %v874
    %v876 = vlaneseq
    %v877 = vshrl.u32 %v876, 7
    %v878 = vsub.s32 %v575, %v877
    %v879 = vrot.slane %v827, %v878
    %v880 = vlaneseq
    %v881 = vshrl.u32 %v880, 7
    %v882 = vsub.s32 %v575, %v881
    %v883 = vrot.slane %v830, %v882
    %v884 = vlaneseq
    %v885 = vshrl.u32 %v884, 7
    %v886 = vsub.s32 %v575, %v885
    %v887 = vrot.slane %v833, %v886
    %v888 = vlaneseq
    %v889 = vshrl.u32 %v888, 7
    %v890 = vsub.s32 %v575, %v889
    %v891 = vrot.slane %v836, %v890
    %v892 = vlaneseq
    %v893 = vshrl.u32 %v892, 7
    %v894 = vsub.s32 %v575, %v893
    %v895 = vrot.slane %v839, %v894
    %v896 = vlaneseq
    %v897 = vshrl.u32 %v896, 7
    %v898 = vsub.s32 %v575, %v897
    %v899 = vrot.slane %v842, %v898
    %v900 = vlaneseq
    %v901 = vshrl.u32 %v900, 7
    %v902 = vsub.s32 %v575, %v901
    %v903 = vrot.slane %v845, %v902
    %v904 = vlaneseq
    %v905 = vshrl.u32 %v904, 7
    %v906 = vsub.s32 %v575, %v905
    %v907 = vrot.slane %v848, %v906
    %v908 = vlaneseq
    %v909 = vshrl.u32 %v908, 7
    %v910 = vsub.s32 %v575, %v909
    %v911 = vrot.slane %v851, %v910
    %v912 = vlaneseq
    %v913 = vshrl.u32 %v912, 7
    %v914 = vsub.s32 %v575, %v913
    %v915 = vrot.slane %v854, %v914
    %v916 = vlaneseq
    %v917 = vshrl.u32 %v916, 7
    %v918 = vsub.s32 %v575, %v917
    %v919 = vrot.slane %v857, %v918
    %v920 = vlaneseq
    %v921 = vshrl.u32 %v920, 7
    %v922 = vsub.s32 %v575, %v921
    %v923 = vrot.slane %v860, %v922
    %v924 = vlaneseq
    %v925 = vshrl.u32 %v924, 7
    %v926 = vsub.s32 %v575, %v925
    %v927 = vrot.slane %v863, %v926
    %v928 = vsel %vm640, %v871, %v867
    %v929 = vsel %vm642, %v875, %v928
    %v930 = vsel %vm644, %v879, %v929
    %v931 = vsel %vm646, %v883, %v930
    %v932 = vsel %vm648, %v887, %v931
    %v933 = vsel %vm650, %v891, %v932
    %v934 = vsel %vm652, %v895, %v933
    %v935 = vsel %vm640, %v903, %v899
    %v936 = vsel %vm642, %v907, %v935
    %v937 = vsel %vm644, %v911, %v936
    %v938 = vsel %vm646, %v915, %v937
    %v939 = vsel %vm648, %v919, %v938
    %v940 = vsel %vm650, %v923, %v939
    %v941 = vsel %vm652, %v927, %v940
    %v944 = vsel %vm663, %v934, 0.0
    %945 = vadd.xlane.f32.xlu0 %v944
    %v946 = vpop.xlane.xlu0 %945
    %v947 = vsel %vm663, %v941, 0.0
    %948 = vadd.xlane.f32.xlu0 %v947
    %v949 = vpop.xlane.xlu0 %948
    %v952 = vlaneseq
    %v953 = vshrl.u32 %v952, 7
    %v954 = vsub.s32 0, %v953
    %v955 = vrot.slane %v946, %v954
    %v956 = vlaneseq
    %v957 = vshrl.u32 %v956, 7
    %v958 = vsub.s32 1, %v957
    %v959 = vrot.slane %v946, %v958
    %v960 = vlaneseq
    %v961 = vshrl.u32 %v960, 7
    %v962 = vsub.s32 2, %v961
    %v963 = vrot.slane %v946, %v962
    %v964 = vlaneseq
    %v965 = vshrl.u32 %v964, 7
    %v966 = vsub.s32 3, %v965
    %v967 = vrot.slane %v946, %v966
    %v968 = vlaneseq
    %v969 = vshrl.u32 %v968, 7
    %v970 = vsub.s32 4, %v969
    %v971 = vrot.slane %v946, %v970
    %v972 = vlaneseq
    %v973 = vshrl.u32 %v972, 7
    %v974 = vsub.s32 5, %v973
    %v975 = vrot.slane %v946, %v974
    %v976 = vlaneseq
    %v977 = vshrl.u32 %v976, 7
    %v978 = vsub.s32 6, %v977
    %v979 = vrot.slane %v946, %v978
    %v980 = vlaneseq
    %v981 = vshrl.u32 %v980, 7
    %v982 = vsub.s32 7, %v981
    %v983 = vrot.slane %v946, %v982
    %v984 = vlaneseq
    %v985 = vshrl.u32 %v984, 7
    %v986 = vsub.s32 0, %v985
    %v987 = vrot.slane %v949, %v986
    %v988 = vlaneseq
    %v989 = vshrl.u32 %v988, 7
    %v990 = vsub.s32 1, %v989
    %v991 = vrot.slane %v949, %v990
    %v992 = vlaneseq
    %v993 = vshrl.u32 %v992, 7
    %v994 = vsub.s32 2, %v993
    %v995 = vrot.slane %v949, %v994
    %v996 = vlaneseq
    %v997 = vshrl.u32 %v996, 7
    %v998 = vsub.s32 3, %v997
    %v999 = vrot.slane %v949, %v998
    %v1000 = vlaneseq
    %v1001 = vshrl.u32 %v1000, 7
    %v1002 = vsub.s32 4, %v1001
    %v1003 = vrot.slane %v949, %v1002
    %v1004 = vlaneseq
    %v1005 = vshrl.u32 %v1004, 7
    %v1006 = vsub.s32 5, %v1005
    %v1007 = vrot.slane %v949, %v1006
    %v1008 = vlaneseq
    %v1009 = vshrl.u32 %v1008, 7
    %v1010 = vsub.s32 6, %v1009
    %v1011 = vrot.slane %v949, %v1010
    %v1012 = vlaneseq
    %v1013 = vshrl.u32 %v1012, 7
    %v1014 = vsub.s32 7, %v1013
    %v1015 = vrot.slane %v949, %v1014
    %v1032 = vrcp.pop %v955
    %v1033 = vmul.f32 %v769, %v1032
    %v1034 = vrcp.pop %v959
    %v1035 = vmul.f32 %v771, %v1034
    %v1036 = vrcp.pop %v963
    %v1037 = vmul.f32 %v773, %v1036
    %v1038 = vrcp.pop %v967
    %v1039 = vmul.f32 %v775, %v1038
    %v1040 = vrcp.pop %v971
    %v1041 = vmul.f32 %v777, %v1040
    %v1042 = vrcp.pop %v975
    %v1043 = vmul.f32 %v779, %v1042
    %v1044 = vrcp.pop %v979
    %v1045 = vmul.f32 %v781, %v1044
    %v1046 = vrcp.pop %v983
    %v1047 = vmul.f32 %v783, %v1046
    %v1048 = vrcp.pop %v987
    %v1049 = vmul.f32 %v785, %v1048
    %v1050 = vrcp.pop %v991
    %v1051 = vmul.f32 %v787, %v1050
    %v1052 = vrcp.pop %v995
    %v1053 = vmul.f32 %v789, %v1052
    %v1054 = vrcp.pop %v999
    %v1055 = vmul.f32 %v791, %v1054
    %v1056 = vrcp.pop %v1003
    %v1057 = vmul.f32 %v793, %v1056
    %v1058 = vrcp.pop %v1007
    %v1059 = vmul.f32 %v795, %v1058
    %v1060 = vrcp.pop %v1011
    %v1061 = vmul.f32 %v797, %v1060
    %v1062 = vrcp.pop %v1015
    %v1063 = vmul.f32 %v799, %v1062
    %1065 = vset.pattern.permute.xlu0 0
    %1066 = vperm.xlu0 %1065, %v1033
    %v1067 = vpop.permute.xlu0 %1066
    %1070 = vset.pattern.permute.xlu0 0
    %1071 = vperm.xlu0 %1070, %v1035
    %v1072 = vpop.permute.xlu0 %1071
    %1075 = vset.pattern.permute.xlu0 0
    %1076 = vperm.xlu0 %1075, %v1037
    %v1077 = vpop.permute.xlu0 %1076
    %1080 = vset.pattern.permute.xlu0 0
    %1081 = vperm.xlu0 %1080, %v1039
    %v1082 = vpop.permute.xlu0 %1081
    %1085 = vset.pattern.permute.xlu0 0
    %1086 = vperm.xlu0 %1085, %v1041
    %v1087 = vpop.permute.xlu0 %1086
    %1090 = vset.pattern.permute.xlu0 0
    %1091 = vperm.xlu0 %1090, %v1043
    %v1092 = vpop.permute.xlu0 %1091
    %1095 = vset.pattern.permute.xlu0 0
    %1096 = vperm.xlu0 %1095, %v1045
    %v1097 = vpop.permute.xlu0 %1096
    %1100 = vset.pattern.permute.xlu0 0
    %1101 = vperm.xlu0 %1100, %v1047
    %v1102 = vpop.permute.xlu0 %1101
    %1105 = vset.pattern.permute.xlu0 0
    %1106 = vperm.xlu0 %1105, %v1049
    %v1107 = vpop.permute.xlu0 %1106
    %1110 = vset.pattern.permute.xlu0 0
    %1111 = vperm.xlu0 %1110, %v1051
    %v1112 = vpop.permute.xlu0 %1111
    %1115 = vset.pattern.permute.xlu0 0
    %1116 = vperm.xlu0 %1115, %v1053
    %v1117 = vpop.permute.xlu0 %1116
    %1120 = vset.pattern.permute.xlu0 0
    %1121 = vperm.xlu0 %1120, %v1055
    %v1122 = vpop.permute.xlu0 %1121
    %1125 = vset.pattern.permute.xlu0 0
    %1126 = vperm.xlu0 %1125, %v1057
    %v1127 = vpop.permute.xlu0 %1126
    %1130 = vset.pattern.permute.xlu0 0
    %1131 = vperm.xlu0 %1130, %v1059
    %v1132 = vpop.permute.xlu0 %1131
    %1135 = vset.pattern.permute.xlu0 0
    %1136 = vperm.xlu0 %1135, %v1061
    %v1137 = vpop.permute.xlu0 %1136
    %1140 = vset.pattern.permute.xlu0 0
    %1141 = vperm.xlu0 %1140, %v1063
    %v1142 = vpop.permute.xlu0 %1141
    %v1144 = vmul.f32 %v1067, %v59
    %v1145 = vmul.f32 %v1072, %v60
    %v1146 = vmul.f32 %v1077, %v61
    %v1147 = vmul.f32 %v1082, %v62
    %v1148 = vmul.f32 %v1087, %v63
    %v1149 = vmul.f32 %v1092, %v64
    %v1150 = vmul.f32 %v1097, %v65
    %v1151 = vmul.f32 %v1102, %v66
    %v1152 = vmul.f32 %v1107, %v67
    %v1153 = vmul.f32 %v1112, %v68
    %v1154 = vmul.f32 %v1117, %v69
    %v1155 = vmul.f32 %v1122, %v70
    %v1156 = vmul.f32 %v1127, %v71
    %v1157 = vmul.f32 %v1132, %v72
    %v1158 = vmul.f32 %v1137, %v73
    %v1159 = vmul.f32 %v1142, %v74
    %v1160 = vsel %vm79, %v1144, 0.0
    %v1161 = vrot.slane %v1160, 4
    %v1162 = vadd.f32 %v1160, %v1161
    %v1163 = vrot.slane %v1162, 2
    %v1164 = vadd.f32 %v1162, %v1163
    %v1165 = vrot.slane %v1164, 1
    %v1166 = vadd.f32 %v1164, %v1165
    %v1167 = vsel %vm79, %v1145, 0.0
    %v1168 = vrot.slane %v1167, 4
    %v1169 = vadd.f32 %v1167, %v1168
    %v1170 = vrot.slane %v1169, 2
    %v1171 = vadd.f32 %v1169, %v1170
    %v1172 = vrot.slane %v1171, 1
    %v1173 = vadd.f32 %v1171, %v1172
    %v1174 = vsel %vm79, %v1146, 0.0
    %v1175 = vrot.slane %v1174, 4
    %v1176 = vadd.f32 %v1174, %v1175
    %v1177 = vrot.slane %v1176, 2
    %v1178 = vadd.f32 %v1176, %v1177
    %v1179 = vrot.slane %v1178, 1
    %v1180 = vadd.f32 %v1178, %v1179
    %v1181 = vsel %vm79, %v1147, 0.0
    %v1182 = vrot.slane %v1181, 4
    %v1183 = vadd.f32 %v1181, %v1182
    %v1184 = vrot.slane %v1183, 2
    %v1185 = vadd.f32 %v1183, %v1184
    %v1186 = vrot.slane %v1185, 1
    %v1187 = vadd.f32 %v1185, %v1186
    %v1188 = vsel %vm79, %v1148, 0.0
    %v1189 = vrot.slane %v1188, 4
    %v1190 = vadd.f32 %v1188, %v1189
    %v1191 = vrot.slane %v1190, 2
    %v1192 = vadd.f32 %v1190, %v1191
    %v1193 = vrot.slane %v1192, 1
    %v1194 = vadd.f32 %v1192, %v1193
    %v1195 = vsel %vm79, %v1149, 0.0
    %v1196 = vrot.slane %v1195, 4
    %v1197 = vadd.f32 %v1195, %v1196
    %v1198 = vrot.slane %v1197, 2
    %v1199 = vadd.f32 %v1197, %v1198
    %v1200 = vrot.slane %v1199, 1
    %v1201 = vadd.f32 %v1199, %v1200
    %v1202 = vsel %vm79, %v1150, 0.0
    %v1203 = vrot.slane %v1202, 4
    %v1204 = vadd.f32 %v1202, %v1203
    %v1205 = vrot.slane %v1204, 2
    %v1206 = vadd.f32 %v1204, %v1205
    %v1207 = vrot.slane %v1206, 1
    %v1208 = vadd.f32 %v1206, %v1207
    %v1209 = vsel %vm79, %v1151, 0.0
    %v1210 = vrot.slane %v1209, 4
    %v1211 = vadd.f32 %v1209, %v1210
    %v1212 = vrot.slane %v1211, 2
    %v1213 = vadd.f32 %v1211, %v1212
    %v1214 = vrot.slane %v1213, 1
    %v1215 = vadd.f32 %v1213, %v1214
    %v1216 = vsel %vm79, %v1152, 0.0
    %v1217 = vrot.slane %v1216, 4
    %v1218 = vadd.f32 %v1216, %v1217
    %v1219 = vrot.slane %v1218, 2
    %v1220 = vadd.f32 %v1218, %v1219
    %v1221 = vrot.slane %v1220, 1
    %v1222 = vadd.f32 %v1220, %v1221
    %v1223 = vsel %vm79, %v1153, 0.0
    %v1224 = vrot.slane %v1223, 4
    %v1225 = vadd.f32 %v1223, %v1224
    %v1226 = vrot.slane %v1225, 2
    %v1227 = vadd.f32 %v1225, %v1226
    %v1228 = vrot.slane %v1227, 1
    %v1229 = vadd.f32 %v1227, %v1228
    %v1230 = vsel %vm79, %v1154, 0.0
    %v1231 = vrot.slane %v1230, 4
    %v1232 = vadd.f32 %v1230, %v1231
    %v1233 = vrot.slane %v1232, 2
    %v1234 = vadd.f32 %v1232, %v1233
    %v1235 = vrot.slane %v1234, 1
    %v1236 = vadd.f32 %v1234, %v1235
    %v1237 = vsel %vm79, %v1155, 0.0
    %v1238 = vrot.slane %v1237, 4
    %v1239 = vadd.f32 %v1237, %v1238
    %v1240 = vrot.slane %v1239, 2
    %v1241 = vadd.f32 %v1239, %v1240
    %v1242 = vrot.slane %v1241, 1
    %v1243 = vadd.f32 %v1241, %v1242
    %v1244 = vsel %vm79, %v1156, 0.0
    %v1245 = vrot.slane %v1244, 4
    %v1246 = vadd.f32 %v1244, %v1245
    %v1247 = vrot.slane %v1246, 2
    %v1248 = vadd.f32 %v1246, %v1247
    %v1249 = vrot.slane %v1248, 1
    %v1250 = vadd.f32 %v1248, %v1249
    %v1251 = vsel %vm79, %v1157, 0.0
    %v1252 = vrot.slane %v1251, 4
    %v1253 = vadd.f32 %v1251, %v1252
    %v1254 = vrot.slane %v1253, 2
    %v1255 = vadd.f32 %v1253, %v1254
    %v1256 = vrot.slane %v1255, 1
    %v1257 = vadd.f32 %v1255, %v1256
    %v1258 = vsel %vm79, %v1158, 0.0
    %v1259 = vrot.slane %v1258, 4
    %v1260 = vadd.f32 %v1258, %v1259
    %v1261 = vrot.slane %v1260, 2
    %v1262 = vadd.f32 %v1260, %v1261
    %v1263 = vrot.slane %v1262, 1
    %v1264 = vadd.f32 %v1262, %v1263
    %v1265 = vsel %vm79, %v1159, 0.0
    %v1266 = vrot.slane %v1265, 4
    %v1267 = vadd.f32 %v1265, %v1266
    %v1268 = vrot.slane %v1267, 2
    %v1269 = vadd.f32 %v1267, %v1268
    %v1270 = vrot.slane %v1269, 1
    %v1271 = vadd.f32 %v1269, %v1270
    %v1288 = vsel %vm640, %v1173, %v1166
    %v1289 = vsel %vm642, %v1180, %v1288
    %v1290 = vsel %vm644, %v1187, %v1289
    %v1291 = vsel %vm646, %v1194, %v1290
    %v1292 = vsel %vm648, %v1201, %v1291
    %v1293 = vsel %vm650, %v1208, %v1292
    %v1294 = vsel %vm652, %v1215, %v1293
    %v1295 = vsel %vm640, %v1229, %v1222
    %v1296 = vsel %vm642, %v1236, %v1295
    %v1297 = vsel %vm644, %v1243, %v1296
    %v1298 = vsel %vm646, %v1250, %v1297
    %v1299 = vsel %vm648, %v1257, %v1298
    %v1300 = vsel %vm650, %v1264, %v1299
    %v1301 = vsel %vm652, %v1271, %v1300
    %1304 = vst.msk [vmem:[#allocation8] sm:$0xff] %vm79, %v1294
    %1305 = vst.msk [vmem:[#allocation8 + $0x8] sm:$0xff] %vm79, %v1301
    // Predicated region
    $region30: #{tpu_custom_call.1} parent=1 // pred_check
      _
    $region31: #{tpu_custom_call.1} parent=1 // pred_check_branch
      %1307 = sbr.rel (0) target = $region33
    $region32: #{tpu_custom_call.1} parent=1 // pred_region
      %s1309 = ssub.s32 256, 256
      %1310 = vsyncadd [#allocation4], %s1309
      %s1311 = sshll.u32 [#allocation8], 4
      %s1312 = int_to_ptr.vmem [resolvable:$true] %s1311
      %1317 = dma.vmem_to_hbm [thread:$0]  %s1312, 256, %s4, [#allocation4], 128, 128, 8
    $region33: #{tpu_custom_call.1} parent=1 // pred_fallthru
      _
    // Predicated region
    $region34: #{tpu_custom_call.1} parent=1 // pred_check
      _
    $region35: #{tpu_custom_call.1} parent=1 // pred_check_branch
      %1319 = sbr.rel (0) target = $region37
    $region36: #{tpu_custom_call.1} parent=1 // pred_region
      %1320 = dma.done [#allocation4], 256
    $region37: #{tpu_custom_call.1} parent=1 // pred_fallthru
      _
    %1321 = vsyncpa [#allocation3], 1
    %1322 = vsyncpa [#allocation6], 1
    %1323 = vsyncpa [#allocation4], 1

</llo_original>
